<compile_context>
chip_gen: v7x
topology: tpu7x:2x2x1
jax: 0.10.0
libtpu: 0.0.40
codegen_flags: <defaults>
</compile_context>

<pallas_src>
import functools

import jax
import jax.numpy as jnp
from jax.experimental import pallas as pl
from jax.experimental.pallas import tpu as pltpu

LANE = 128


def _round_up(n, m):
    return ((n + m - 1) // m) * m


def _sage2_fused_kernel(a0_ref, a1_ref, h_ref,
                        ws0_ref, wn0_ref, b0_ref,
                        ws1_ref, wn1_ref, b1_ref,
                        o_ref, *, d0, d1):
    """Fused 2-layer SAGEConv('mean'): aggregation + matmuls + bias (+relu).

    All matmul operands are bf16, accumulation is f32 (MXU-native).
    The intermediate layer-0 activations stay inside the kernel (VMEM/vregs).
    """
    # ---------------- layer 0 (aggregate first: out_feats >= in_feats) -------
    # mean aggregation over neighbors: A0 is pre-row-normalized.
    agg0 = jnp.dot(a0_ref[...], h_ref[...], preferred_element_type=jnp.float32)
    h_neigh0 = jnp.dot(agg0.astype(jnp.bfloat16), wn0_ref[...],
                       preferred_element_type=jnp.float32)
    # dst nodes are the first d0 rows of the src features (static slice, free).
    h_self0 = jnp.dot(h_ref[0:d0, :], ws0_ref[...],
                      preferred_element_type=jnp.float32)
    h1 = jnp.maximum(h_self0 + h_neigh0 + b0_ref[...], 0.0)   # f32 epilogue
    # dropout: identity (eval mode)
    h1_bf = h1.astype(jnp.bfloat16)

    # ---------------- layer 1 (project first: out_feats < in_feats) ----------
    proj1 = jnp.dot(h1_bf, wn1_ref[...], preferred_element_type=jnp.float32)
    h_neigh1 = jnp.dot(a1_ref[...], proj1.astype(jnp.bfloat16),
                       preferred_element_type=jnp.float32)
    h_self1 = jnp.dot(h1_bf[0:d1, :], ws1_ref[...],
                      preferred_element_type=jnp.float32)
    out = h_self1 + h_neigh1 + b1_ref[...]                     # f32 epilogue
    o_ref[...] = out.astype(o_ref.dtype)


def sage_forward(blocks, x, params):
    """blocks: [A0 (d0, s0), A1 (d1, d0)] dense row-normalized adjacencies.
    x: (s0, in_feats) source-node features of the first block.
    Returns (d1, n_classes) logits (f32)."""
    a0, a1 = blocks
    d0, s0 = a0.shape
    d1 = a1.shape[0]
    in_f = x.shape[1]
    hid = params[0]["w_self"].shape[1]
    cls = params[1]["w_self"].shape[1]

    in_p = _round_up(in_f, LANE)
    hid_p = _round_up(hid, LANE)
    cls_p = _round_up(cls, LANE)

    # ---- zero-pad feature dims to 128 lanes; cast matmul operands to bf16 ---
    def pad_cols(m, cols):
        return jnp.pad(m, ((0, 0), (0, cols - m.shape[1])))

    def pad2(m, rows, cols):
        return jnp.pad(m, ((0, rows - m.shape[0]), (0, cols - m.shape[1])))

    h_p = pad_cols(x, in_p).astype(jnp.bfloat16)
    a0_b = a0.astype(jnp.bfloat16)
    a1_b = a1.astype(jnp.bfloat16)
    ws0 = pad2(params[0]["w_self"], in_p, hid_p).astype(jnp.bfloat16)
    wn0 = pad2(params[0]["w_neigh"], in_p, hid_p).astype(jnp.bfloat16)
    b0 = pad_cols(params[0]["bias"].reshape(1, -1), hid_p).astype(jnp.float32)
    ws1 = pad2(params[1]["w_self"], hid_p, cls_p).astype(jnp.bfloat16)
    wn1 = pad2(params[1]["w_neigh"], hid_p, cls_p).astype(jnp.bfloat16)
    b1 = pad_cols(params[1]["bias"].reshape(1, -1), cls_p).astype(jnp.float32)

    operands = (a0_b, a1_b, h_p, ws0, wn0, b0, ws1, wn1, b1)

    flops = 2 * (d0 * s0 * in_p          # A0 @ h
                 + 2 * d0 * in_p * hid_p  # self + neigh projections, layer 0
                 + d0 * hid_p * cls_p     # h1 @ W_neigh1
                 + d1 * d0 * cls_p        # A1 @ proj
                 + d1 * hid_p * cls_p)    # h1_dst @ W_self1
    bytes_accessed = sum(int(o.size) * o.dtype.itemsize for o in operands) \
        + d1 * cls_p * 4
    cost = pl.CostEstimate(flops=flops, transcendentals=0,
                           bytes_accessed=bytes_accessed)

    kernel = functools.partial(_sage2_fused_kernel, d0=d0, d1=d1)
    out_p = pl.pallas_call(
        kernel,
        out_shape=jax.ShapeDtypeStruct((d1, cls_p), jnp.float32),
        in_specs=[pl.BlockSpec(memory_space=pltpu.MemorySpace.VMEM)] * 9,
        out_specs=pl.BlockSpec(memory_space=pltpu.MemorySpace.VMEM),
        cost_estimate=cost,
    )(*operands)
    return out_p[:, :cls]


def _row_normalize(a):
    deg = jnp.sum(a, axis=1, keepdims=True)
    return a / jnp.maximum(deg, 1.0)


def _init_linear(key, fan_in, fan_out):
    scale = 1.0 / jnp.sqrt(jnp.float32(fan_in))
    return jax.random.uniform(key, (fan_in, fan_out), jnp.float32, -scale, scale)


if __name__ == "__main__":
    key = jax.random.PRNGKey(0)

    # small, forward-consistent shapes
    in_feats, n_hidden, n_classes = 16, 32, 8
    num_src0, num_dst0 = 32, 16       # block 0: 32 src nodes -> 16 dst nodes
    num_src1, num_dst1 = num_dst0, 8  # block 1: 16 src nodes ->  8 dst nodes

    k_a0, k_a1, k_x, k_w = jax.random.split(key, 4)

    # deterministic random bipartite blocks (dense 0/1), row-normalized ('mean')
    a0 = (jax.random.uniform(k_a0, (num_dst0, num_src0)) < 0.3).astype(jnp.float32)
    a1 = (jax.random.uniform(k_a1, (num_dst1, num_src1)) < 0.4).astype(jnp.float32)
    blocks = [_row_normalize(a0), _row_normalize(a1)]

    # input node features for the outermost block's src nodes
    x = jax.random.normal(k_x, (num_src0, in_feats), jnp.float32)

    # deterministic parameter init (SAGEConv: fc_self, fc_neigh, + layer bias)
    kw = jax.random.split(k_w, 6)
    params = [
        {
            "w_self": _init_linear(kw[0], in_feats, n_hidden),
            "w_neigh": _init_linear(kw[1], in_feats, n_hidden),
            "bias": jnp.zeros((n_hidden,), jnp.float32),
        },
        {
            "w_self": _init_linear(kw[2], n_hidden, n_classes),
            "w_neigh": _init_linear(kw[3], n_hidden, n_classes),
            "bias": jnp.zeros((n_classes,), jnp.float32),
        },
    ]

    out = sage_forward(blocks, x, params)
    out = jax.block_until_ready(out)
    assert out.shape == (num_dst1, n_classes)

    # pure-JAX reference that mirrors the kernel's bf16-operand / f32-accumulate
    # numerics (inputs rounded to bf16, layer-0 activations rounded to bf16).
    def ref_forward(blocks, x, params):
        def bf(v):
            return v.astype(jnp.bfloat16).astype(jnp.float32)
        h = bf(x)
        for l, (a, p) in enumerate(zip(blocks, params)):
            a_b = bf(a)
            ws, wn = bf(p["w_self"]), bf(p["w_neigh"])
            h_dst = h[: a.shape[0]]
            agg = bf(a_b @ h) if l == 0 else a_b @ bf(h @ wn)
            neigh = agg @ wn if l == 0 else agg
            h = h_dst @ ws + neigh + p["bias"]
            if l != len(params) - 1:
                h = bf(jnp.maximum(h, 0.0))
        return h

    ref = ref_forward(blocks, x, params)
    assert jnp.allclose(out, ref, atol=1e-2, rtol=1e-2), (
        jnp.max(jnp.abs(out - ref)))

    # sanity vs. full-f32 math (loose tolerance for bf16 operand rounding)
    def ref_f32(blocks, x, params):
        h = x
        for l, (a, p) in enumerate(zip(blocks, params)):
            h_dst = h[: a.shape[0]]
            h = h_dst @ p["w_self"] + (a @ h) @ p["w_neigh"] + p["bias"]
            if l != len(params) - 1:
                h = jnp.maximum(h, 0.0)
        return h

    assert jnp.allclose(out, ref_f32(blocks, x, params), atol=5e-2, rtol=5e-2)

    print("KERNEL_OK")
</pallas_src>

<mosaic_0001>
module attributes {stable_mosaic.version = 11 : i64} {
  func.func @_sage2_fused_kernel(%arg0: memref<16x32xbf16, #tpu.memory_space<vmem>>, %arg1: memref<8x16xbf16, #tpu.memory_space<vmem>>, %arg2: memref<32x128xbf16, #tpu.memory_space<vmem>>, %arg3: memref<128x128xbf16, #tpu.memory_space<vmem>>, %arg4: memref<128x128xbf16, #tpu.memory_space<vmem>>, %arg5: memref<1x128xf32, #tpu.memory_space<vmem>>, %arg6: memref<128x128xbf16, #tpu.memory_space<vmem>>, %arg7: memref<128x128xbf16, #tpu.memory_space<vmem>>, %arg8: memref<1x128xf32, #tpu.memory_space<vmem>>, %arg9: memref<8x128xf32, #tpu.memory_space<vmem>>) attributes {dimension_semantics = [], scalar_prefetch = 0 : i64, scratch_operands = 0 : i64, tpu.core_type = #tpu.core_type<tc>} {
    %c0 = arith.constant 0 : index
    %c0_0 = arith.constant 0 : index
    %0 = vector.load %arg0[%c0, %c0_0] : memref<16x32xbf16, #tpu.memory_space<vmem>>, vector<16x32xbf16>
    %c0_1 = arith.constant 0 : index
    %c0_2 = arith.constant 0 : index
    %1 = vector.load %arg2[%c0_1, %c0_2] : memref<32x128xbf16, #tpu.memory_space<vmem>>, vector<32x128xbf16>
    %cst = arith.constant dense<0.000000e+00> : vector<16x128xf32>
    %2 = tpu.matmul %0, %1, %cst {dimension_numbers = #tpu.dot_dimension_numbers<[1], [0], [0], [1], [0, 0, 1, 1], [], []>} : vector<16x32xbf16>, vector<32x128xbf16>, vector<16x128xf32> -> vector<16x128xf32>
    %3 = arith.truncf %2 : vector<16x128xf32> to vector<16x128xbf16>
    %c0_3 = arith.constant 0 : index
    %c0_4 = arith.constant 0 : index
    %4 = vector.load %arg4[%c0_3, %c0_4] : memref<128x128xbf16, #tpu.memory_space<vmem>>, vector<128x128xbf16>
    %cst_5 = arith.constant dense<0.000000e+00> : vector<16x128xf32>
    %5 = tpu.matmul %3, %4, %cst_5 {dimension_numbers = #tpu.dot_dimension_numbers<[1], [0], [0], [1], [0, 0, 1, 1], [], []>} : vector<16x128xbf16>, vector<128x128xbf16>, vector<16x128xf32> -> vector<16x128xf32>
    %c0_6 = arith.constant 0 : index
    %c0_7 = arith.constant 0 : index
    %6 = vector.load %arg2[%c0_6, %c0_7] : memref<32x128xbf16, #tpu.memory_space<vmem>>, vector<16x128xbf16>
    %c0_8 = arith.constant 0 : index
    %c0_9 = arith.constant 0 : index
    %7 = vector.load %arg3[%c0_8, %c0_9] : memref<128x128xbf16, #tpu.memory_space<vmem>>, vector<128x128xbf16>
    %cst_10 = arith.constant dense<0.000000e+00> : vector<16x128xf32>
    %8 = tpu.matmul %6, %7, %cst_10 {dimension_numbers = #tpu.dot_dimension_numbers<[1], [0], [0], [1], [0, 0, 1, 1], [], []>} : vector<16x128xbf16>, vector<128x128xbf16>, vector<16x128xf32> -> vector<16x128xf32>
    %9 = arith.addf %8, %5 : vector<16x128xf32>
    %c0_11 = arith.constant 0 : index
    %c0_12 = arith.constant 0 : index
    %10 = vector.load %arg5[%c0_11, %c0_12] : memref<1x128xf32, #tpu.memory_space<vmem>>, vector<1x128xf32>
    %11 = vector.broadcast %10 : vector<1x128xf32> to vector<16x128xf32>
    %12 = arith.addf %9, %11 : vector<16x128xf32>
    %cst_13 = arith.constant 0.000000e+00 : f32
    %13 = vector.broadcast %cst_13 : f32 to vector<16x128xf32>
    %14 = arith.maximumf %12, %13 : vector<16x128xf32>
    %15 = arith.truncf %14 : vector<16x128xf32> to vector<16x128xbf16>
    %c0_14 = arith.constant 0 : index
    %c0_15 = arith.constant 0 : index
    %16 = vector.load %arg7[%c0_14, %c0_15] : memref<128x128xbf16, #tpu.memory_space<vmem>>, vector<128x128xbf16>
    %cst_16 = arith.constant dense<0.000000e+00> : vector<16x128xf32>
    %17 = tpu.matmul %15, %16, %cst_16 {dimension_numbers = #tpu.dot_dimension_numbers<[1], [0], [0], [1], [0, 0, 1, 1], [], []>} : vector<16x128xbf16>, vector<128x128xbf16>, vector<16x128xf32> -> vector<16x128xf32>
    %c0_17 = arith.constant 0 : index
    %c0_18 = arith.constant 0 : index
    %18 = vector.load %arg1[%c0_17, %c0_18] : memref<8x16xbf16, #tpu.memory_space<vmem>>, vector<8x16xbf16>
    %19 = arith.truncf %17 : vector<16x128xf32> to vector<16x128xbf16>
    %cst_19 = arith.constant dense<0.000000e+00> : vector<8x128xf32>
    %20 = tpu.matmul %18, %19, %cst_19 {dimension_numbers = #tpu.dot_dimension_numbers<[1], [0], [0], [1], [0, 0, 1, 1], [], []>} : vector<8x16xbf16>, vector<16x128xbf16>, vector<8x128xf32> -> vector<8x128xf32>
    %21 = vector.extract_strided_slice %15 {offsets = [0, 0], sizes = [8, 128], strides = [1, 1]} : vector<16x128xbf16> to vector<8x128xbf16>
    %c0_20 = arith.constant 0 : index
    %c0_21 = arith.constant 0 : index
    %22 = vector.load %arg6[%c0_20, %c0_21] : memref<128x128xbf16, #tpu.memory_space<vmem>>, vector<128x128xbf16>
    %cst_22 = arith.constant dense<0.000000e+00> : vector<8x128xf32>
    %23 = tpu.matmul %21, %22, %cst_22 {dimension_numbers = #tpu.dot_dimension_numbers<[1], [0], [0], [1], [0, 0, 1, 1], [], []>} : vector<8x128xbf16>, vector<128x128xbf16>, vector<8x128xf32> -> vector<8x128xf32>
    %24 = arith.addf %23, %20 : vector<8x128xf32>
    %c0_23 = arith.constant 0 : index
    %c0_24 = arith.constant 0 : index
    %25 = vector.load %arg8[%c0_23, %c0_24] : memref<1x128xf32, #tpu.memory_space<vmem>>, vector<1x128xf32>
    %26 = vector.broadcast %25 : vector<1x128xf32> to vector<8x128xf32>
    %27 = arith.addf %24, %26 : vector<8x128xf32>
    %c0_25 = arith.constant 0 : index
    %c0_26 = arith.constant 0 : index
    %28 = vector.load %arg9[%c0_25, %c0_26] : memref<8x128xf32, #tpu.memory_space<vmem>>, vector<8x128xf32>
    tpu.vector_store %arg9[%c0_25, %c0_26], %27 {strides = array<i32>} : memref<8x128xf32, #tpu.memory_space<vmem>>, vector<8x128xf32>,
    return
  }
}

</mosaic_0001>

<llo_original>
// kernel: tpu_custom_call.1
$region0: #{tpu_custom_call.1}
  #allocation0 [shape = 'u32[]', space=smem, size = 0x4, offset = 0x4, fixed_abs, tag = 'smem constant byte address 0x4 - core index']
  #allocation1 [shape = 'u32[144,128]{1,0:T(1,128)}', space=vmem, size = 0x12000, scoped, tag = 'internal scratch']
  %s0 = inlined_call_operand.hbm [shape: bf16[16,32], index: 0, kind: input, shape index: {}]
  %s1 = inlined_call_operand.hbm [shape: bf16[8,16], index: 1, kind: input, shape index: {}]
  %s2 = inlined_call_operand.hbm [shape: bf16[32,128], index: 2, kind: input, shape index: {}]
  %s3 = inlined_call_operand.hbm [shape: bf16[128,128], index: 3, kind: input, shape index: {}]
  %s4 = inlined_call_operand.hbm [shape: bf16[128,128], index: 4, kind: input, shape index: {}]
  %s5 = inlined_call_operand.vmem [shape: f32[1,128], index: 5, kind: input, shape index: {}]
  %s6 = inlined_call_operand.hbm [shape: bf16[128,128], index: 6, kind: input, shape index: {}]
  %s7 = inlined_call_operand.hbm [shape: bf16[128,128], index: 7, kind: input, shape index: {}]
  %s8 = inlined_call_operand.vmem [shape: f32[1,128], index: 8, kind: input, shape index: {}]
  %s9 = inlined_call_operand.hbm [shape: f32[8,128], index: 9, kind: output, shape index: {}]
  %s10 = sld [smem:[#allocation0]]
  $region74: #{tpu_custom_call.1} parent=0
    _
  %s12 = ssub.s32 1, %s10
  %s13 = scalar_select 0, %s12, %s10
  $region1: #{tpu_custom_call.1} parent=0
    #allocation2 [shape = 'u8[4096]{0}', space=vmem, size = 0x1000, scoped, tag = 'input window, operand 0, single buffered']
    #allocation3 [shape = 's32[1]{0}', space=sflag, size = 0x4, scoped, tag = 'scoped memory for tpu_custom_call.1']
    #allocation4 [shape = 's32[1]{0}', space=sflag, size = 0x4, scoped, tag = 'scoped memory for tpu_custom_call.1']
    #allocation5 [shape = 'u8[2048]{0}', space=vmem, size = 0x800, scoped, tag = 'input window, operand 1, single buffered']
    #allocation6 [shape = 's32[1]{0}', space=sflag, size = 0x4, scoped, tag = 'scoped memory for tpu_custom_call.1']
    #allocation7 [shape = 'u8[8192]{0}', space=vmem, size = 0x2000, scoped, tag = 'input window, operand 2, single buffered']
    #allocation8 [shape = 'u8[32768]{0}', space=vmem, size = 0x8000, scoped, tag = 'input window, operand 3, single buffered']
    #allocation9 [shape = 's32[1]{0}', space=sflag, size = 0x4, scoped, tag = 'scoped memory for tpu_custom_call.1']
    #allocation10 [shape = 'u8[32768]{0}', space=vmem, size = 0x8000, scoped, tag = 'input window, operand 4, single buffered']
    #allocation11 [shape = 'u8[32768]{0}', space=vmem, size = 0x8000, scoped, tag = 'input window, operand 6, single buffered']
    #allocation12 [shape = 's32[1]{0}', space=sflag, size = 0x4, scoped, tag = 'scoped memory for tpu_custom_call.1']
    #allocation13 [shape = 'u8[32768]{0}', space=vmem, size = 0x8000, scoped, tag = 'input window, operand 7, single buffered']
    #allocation14 [shape = 'u8[4096]{0}', space=vmem, size = 0x1000, scoped, tag = 'output window, operand 0, single buffered']
    %14 = vsyncpa [#allocation3], 0
    %15 = vsyncpa [#allocation6], 0
    %16 = vsyncpa [#allocation9], 0
    %17 = vsyncpa [#allocation12], 0
    %18 = vsyncpa [#allocation4], 0
    // Predicated region
    $region2: #{tpu_custom_call.1} parent=1 // pred_check
      _
    $region3: #{tpu_custom_call.1} parent=1 // pred_check_branch
      %20 = sbr.rel (0) target = $region5
    $region4: #{tpu_custom_call.1} parent=1 // pred_region
      %s22 = ssub.s32 128, 128
      %23 = vsyncadd [#allocation3], %s22
      %s24 = sshll.u32 [#allocation2], 4
      %s25 = int_to_ptr.vmem [resolvable:$true] %s24
      %30 = dma.hbm_to_vmem [thread:$0]  %s0, 128, %s25, [#allocation3], 64, 64, 4
    $region5: #{tpu_custom_call.1} parent=1 // pred_fallthru
      _
    // Predicated region
    $region6: #{tpu_custom_call.1} parent=1 // pred_check
      _
    $region7: #{tpu_custom_call.1} parent=1 // pred_check_branch
      %32 = sbr.rel (0) target = $region9
    $region8: #{tpu_custom_call.1} parent=1 // pred_region
      %s34 = ssub.s32 64, 64
      %35 = vsyncadd [#allocation6], %s34
      %s37 = sshll.u32 [#allocation5], 4
      %s38 = int_to_ptr.vmem [resolvable:$true] %s37
      %40 = dma.hbm_to_vmem [thread:$0]  %s1, 64, %s38, [#allocation6]
    $region9: #{tpu_custom_call.1} parent=1 // pred_fallthru
      _
    // Predicated region
    $region10: #{tpu_custom_call.1} parent=1 // pred_check
      _
    $region11: #{tpu_custom_call.1} parent=1 // pred_check_branch
      %42 = sbr.rel (0) target = $region13
    $region12: #{tpu_custom_call.1} parent=1 // pred_region
      %s44 = ssub.s32 256, 256
      %45 = vsyncadd [#allocation6], %s44
      %s46 = sshll.u32 [#allocation7], 4
      %s47 = int_to_ptr.vmem [resolvable:$true] %s46
      %52 = dma.hbm_to_vmem [thread:$0]  %s2, 256, %s47, [#allocation6], 64, 64, 4
    $region13: #{tpu_custom_call.1} parent=1 // pred_fallthru
      _
    // Predicated region
    $region14: #{tpu_custom_call.1} parent=1 // pred_check
      _
    $region15: #{tpu_custom_call.1} parent=1 // pred_check_branch
      %54 = sbr.rel (0) target = $region17
    $region16: #{tpu_custom_call.1} parent=1 // pred_region
      %s56 = ssub.s32 1024, 1024
      %57 = vsyncadd [#allocation9], %s56
      %s58 = sshll.u32 [#allocation8], 4
      %s59 = int_to_ptr.vmem [resolvable:$true] %s58
      %64 = dma.hbm_to_vmem [thread:$0]  %s3, 1024, %s59, [#allocation9], 64, 64, 4
    $region17: #{tpu_custom_call.1} parent=1 // pred_fallthru
      _
    // Predicated region
    $region18: #{tpu_custom_call.1} parent=1 // pred_check
      _
    $region19: #{tpu_custom_call.1} parent=1 // pred_check_branch
      %66 = sbr.rel (0) target = $region21
    $region20: #{tpu_custom_call.1} parent=1 // pred_region
      %s68 = ssub.s32 1024, 1024
      %69 = vsyncadd [#allocation9], %s68
      %s70 = sshll.u32 [#allocation10], 4
      %s71 = int_to_ptr.vmem [resolvable:$true] %s70
      %76 = dma.hbm_to_vmem [thread:$0]  %s4, 1024, %s71, [#allocation9], 64, 64, 4
    $region21: #{tpu_custom_call.1} parent=1 // pred_fallthru
      _
    // Predicated region
    $region22: #{tpu_custom_call.1} parent=1 // pred_check
      _
    $region23: #{tpu_custom_call.1} parent=1 // pred_check_branch
      %78 = sbr.rel (0) target = $region25
    $region24: #{tpu_custom_call.1} parent=1 // pred_region
      _
    $region25: #{tpu_custom_call.1} parent=1 // pred_fallthru
      _
    // Predicated region
    $region26: #{tpu_custom_call.1} parent=1 // pred_check
      _
    $region27: #{tpu_custom_call.1} parent=1 // pred_check_branch
      %80 = sbr.rel (0) target = $region29
    $region28: #{tpu_custom_call.1} parent=1 // pred_region
      %s82 = ssub.s32 1024, 1024
      %83 = vsyncadd [#allocation12], %s82
      %s84 = sshll.u32 [#allocation11], 4
      %s85 = int_to_ptr.vmem [resolvable:$true] %s84
      %90 = dma.hbm_to_vmem [thread:$0]  %s6, 1024, %s85, [#allocation12], 64, 64, 4
    $region29: #{tpu_custom_call.1} parent=1 // pred_fallthru
      _
    // Predicated region
    $region30: #{tpu_custom_call.1} parent=1 // pred_check
      _
    $region31: #{tpu_custom_call.1} parent=1 // pred_check_branch
      %92 = sbr.rel (0) target = $region33
    $region32: #{tpu_custom_call.1} parent=1 // pred_region
      %s94 = ssub.s32 1024, 1024
      %95 = vsyncadd [#allocation12], %s94
      %s96 = sshll.u32 [#allocation13], 4
      %s97 = int_to_ptr.vmem [resolvable:$true] %s96
      %102 = dma.hbm_to_vmem [thread:$0]  %s7, 1024, %s97, [#allocation12], 64, 64, 4
    $region33: #{tpu_custom_call.1} parent=1 // pred_fallthru
      _
    // Predicated region
    $region34: #{tpu_custom_call.1} parent=1 // pred_check
      _
    $region35: #{tpu_custom_call.1} parent=1 // pred_check_branch
      %104 = sbr.rel (0) target = $region37
    $region36: #{tpu_custom_call.1} parent=1 // pred_region
      _
    $region37: #{tpu_custom_call.1} parent=1 // pred_fallthru
      _
    // Predicated region
    $region38: #{tpu_custom_call.1} parent=1 // pred_check
      _
    $region39: #{tpu_custom_call.1} parent=1 // pred_check_branch
      %106 = sbr.rel (0) target = $region41
    $region40: #{tpu_custom_call.1} parent=1 // pred_region
      %107 = dma.done [#allocation3], 128
    $region41: #{tpu_custom_call.1} parent=1 // pred_fallthru
      _
    // Predicated region
    $region42: #{tpu_custom_call.1} parent=1 // pred_check
      _
    $region43: #{tpu_custom_call.1} parent=1 // pred_check_branch
      %109 = sbr.rel (0) target = $region45
    $region44: #{tpu_custom_call.1} parent=1 // pred_region
      %110 = dma.done [#allocation6], 64
    $region45: #{tpu_custom_call.1} parent=1 // pred_fallthru
      _
    // Predicated region
    $region46: #{tpu_custom_call.1} parent=1 // pred_check
      _
    $region47: #{tpu_custom_call.1} parent=1 // pred_check_branch
      %112 = sbr.rel (0) target = $region49
    $region48: #{tpu_custom_call.1} parent=1 // pred_region
      %113 = dma.done [#allocation6], 256
    $region49: #{tpu_custom_call.1} parent=1 // pred_fallthru
      _
    // Predicated region
    $region50: #{tpu_custom_call.1} parent=1 // pred_check
      _
    $region51: #{tpu_custom_call.1} parent=1 // pred_check_branch
      %115 = sbr.rel (0) target = $region53
    $region52: #{tpu_custom_call.1} parent=1 // pred_region
      %116 = dma.done [#allocation9], 1024
    $region53: #{tpu_custom_call.1} parent=1 // pred_fallthru
      _
    // Predicated region
    $region54: #{tpu_custom_call.1} parent=1 // pred_check
      _
    $region55: #{tpu_custom_call.1} parent=1 // pred_check_branch
      %118 = sbr.rel (0) target = $region57
    $region56: #{tpu_custom_call.1} parent=1 // pred_region
      %119 = dma.done [#allocation9], 1024
    $region57: #{tpu_custom_call.1} parent=1 // pred_fallthru
      _
    // Predicated region
    $region58: #{tpu_custom_call.1} parent=1 // pred_check
      _
    $region59: #{tpu_custom_call.1} parent=1 // pred_check_branch
      %121 = sbr.rel (0) target = $region61
    $region60: #{tpu_custom_call.1} parent=1 // pred_region
      %122 = dma.done [#allocation12], 1024
    $region61: #{tpu_custom_call.1} parent=1 // pred_fallthru
      _
    // Predicated region
    $region62: #{tpu_custom_call.1} parent=1 // pred_check
      _
    $region63: #{tpu_custom_call.1} parent=1 // pred_check_branch
      %124 = sbr.rel (0) target = $region65
    $region64: #{tpu_custom_call.1} parent=1 // pred_region
      %125 = dma.done [#allocation12], 1024
    $region65: #{tpu_custom_call.1} parent=1 // pred_fallthru
      _
    %v127 = vld [vmem:[#allocation2] sm:$0xf]
    %v128 = vld [vmem:[#allocation2 + $0x4] sm:$0xf]
    %v129 = vld [vmem:[#allocation7] sm:$0xf]
    %v130 = vld [vmem:[#allocation7 + $0x4] sm:$0xf]
    %v131 = vld [vmem:[#allocation7 + $0x8] sm:$0xf]
    %v132 = vld [vmem:[#allocation7 + $0xc] sm:$0xf]
    %v135 = vunpack.c.l.b16 %v127
    %v136 = vunpack.c.l.b16 %v128
    %v137 = vpack.c.b16 %v136, %v135
    %v142 = vunpack.c.l.b16 %v129
    %v143 = vunpack.c.l.b16 %v130
    %v144 = vunpack.c.l.b16 %v131
    %v145 = vunpack.c.l.b16 %v132
    %v146 = vpack.c.b16 %v143, %v142
    %v147 = vpack.c.b16 %v145, %v144
    %vm150 = vcmask 261120
    %v152 = vsel %vm150, %v137, 0
    %154 = vmatprep.subr.bf16.mxu0 0
    %155 = vmatpush1.bf16.msra.mxu0 %v146
    %156 = vmatprep.subr.bf16.mxu0 0
    %157 = vmatpush1.bf16.msra.mxu0 %v147
    %158 = vmatprep.subr.bf16.mxu0 0
    %159 = vmatpush1.bf16.msra.mxu0 0
    %160 = vmatprep.subr.bf16.mxu0 0
    %161 = vmatpush1.bf16.msra.mxu0 0
    %162 = vmatprep.subr.bf16.mxu0 0
    %163 = vmatpush1.bf16.msra.mxu0 0
    %164 = vmatprep.subr.bf16.mxu0 0
    %165 = vmatpush1.bf16.msra.mxu0 0
    %166 = vmatprep.subr.bf16.mxu0 0
    %167 = vmatpush1.bf16.msra.mxu0 0
    %168 = vmatprep.subr.bf16.mxu0 0
    %169 = vmatpush1.bf16.msra.mxu0 0
    %170 = vmatprep.subr.bf16.mxu0 0
    %171 = vmatpush1.bf16.msra.mxu0 0
    %172 = vmatprep.subr.bf16.mxu0 0
    %173 = vmatpush1.bf16.msra.mxu0 0
    %174 = vmatprep.subr.bf16.mxu0 0
    %175 = vmatpush1.bf16.msra.mxu0 0
    %176 = vmatprep.subr.bf16.mxu0 0
    %177 = vmatpush1.bf16.msra.mxu0 0
    %178 = vmatprep.subr.bf16.mxu0 0
    %179 = vmatpush1.bf16.msra.mxu0 0
    %180 = vmatprep.subr.bf16.mxu0 0
    %181 = vmatpush1.bf16.msra.mxu0 0
    %182 = vmatprep.subr.bf16.mxu0 0
    %183 = vmatpush1.bf16.msra.mxu0 0
    %184 = vmatprep.subr.bf16.mxu0 0
    %185 = vmatpush1.bf16.msra.mxu0 0
    %186 = vmatprep.mubr.bf16.mxu0 0
    %187 = vmatmul.mubr.bf16.gmra.mrb[0].mxu0 %v152
    %v188 = vpop.f32.mrb[0].mxu0
    %v189 = vadd.f32 0.0, %v188
    %v190 = vpop.f32.mrb[0].mxu0
    %v191 = vpop.f32.mrb[0].mxu0
    %v192 = vadd.f32 0.0, %v191
    %v193 = vpop.f32.mrb[0].mxu0
    %194 = vdwg.mxu0
    %v195 = vpack.c.bf16 %v192, %v189
    %v196 = vld [vmem:[#allocation10] sm:$0xf]
    %v197 = vld [vmem:[#allocation10 + $0x4] sm:$0xf]
    %v198 = vld [vmem:[#allocation10 + $0x8] sm:$0xf]
    %v199 = vld [vmem:[#allocation10 + $0xc] sm:$0xf]
    %v200 = vld [vmem:[#allocation10 + $0x10] sm:$0xf]
    %v201 = vld [vmem:[#allocation10 + $0x14] sm:$0xf]
    %v202 = vld [vmem:[#allocation10 + $0x18] sm:$0xf]
    %v203 = vld [vmem:[#allocation10 + $0x1c] sm:$0xf]
    %v204 = vld [vmem:[#allocation10 + $0x20] sm:$0xf]
    %v205 = vld [vmem:[#allocation10 + $0x24] sm:$0xf]
    %v206 = vld [vmem:[#allocation10 + $0x28] sm:$0xf]
    %v207 = vld [vmem:[#allocation10 + $0x2c] sm:$0xf]
    %v208 = vld [vmem:[#allocation10 + $0x30] sm:$0xf]
    %v209 = vld [vmem:[#allocation10 + $0x34] sm:$0xf]
    %v210 = vld [vmem:[#allocation10 + $0x38] sm:$0xf]
    %v211 = vld [vmem:[#allocation10 + $0x3c] sm:$0xf]
    %v228 = vunpack.c.l.b16 %v196
    %v229 = vunpack.c.l.b16 %v197
    %v230 = vunpack.c.l.b16 %v198
    %v231 = vunpack.c.l.b16 %v199
    %v232 = vunpack.c.l.b16 %v200
    %v233 = vunpack.c.l.b16 %v201
    %v234 = vunpack.c.l.b16 %v202
    %v235 = vunpack.c.l.b16 %v203
    %v236 = vunpack.c.l.b16 %v204
    %v237 = vunpack.c.l.b16 %v205
    %v238 = vunpack.c.l.b16 %v206
    %v239 = vunpack.c.l.b16 %v207
    %v240 = vunpack.c.l.b16 %v208
    %v241 = vunpack.c.l.b16 %v209
    %v242 = vunpack.c.l.b16 %v210
    %v243 = vunpack.c.l.b16 %v211
    %v244 = vpack.c.b16 %v229, %v228
    %v245 = vpack.c.b16 %v231, %v230
    %v246 = vpack.c.b16 %v233, %v232
    %v247 = vpack.c.b16 %v235, %v234
    %v248 = vpack.c.b16 %v237, %v236
    %v249 = vpack.c.b16 %v239, %v238
    %v250 = vpack.c.b16 %v241, %v240
    %v251 = vpack.c.b16 %v243, %v242
    %260 = vmatprep.subr.bf16.mxu0 0
    %261 = vmatpush1.bf16.msra.mxu0 %v244
    %262 = vmatprep.subr.bf16.mxu0 0
    %263 = vmatpush1.bf16.msra.mxu0 %v245
    %264 = vmatprep.subr.bf16.mxu0 0
    %265 = vmatpush1.bf16.msra.mxu0 %v246
    %266 = vmatprep.subr.bf16.mxu0 0
    %267 = vmatpush1.bf16.msra.mxu0 %v247
    %268 = vmatprep.subr.bf16.mxu0 0
    %269 = vmatpush1.bf16.msra.mxu0 %v248
    %270 = vmatprep.subr.bf16.mxu0 0
    %271 = vmatpush1.bf16.msra.mxu0 %v249
    %272 = vmatprep.subr.bf16.mxu0 0
    %273 = vmatpush1.bf16.msra.mxu0 %v250
    %274 = vmatprep.subr.bf16.mxu0 0
    %275 = vmatpush1.bf16.msra.mxu0 %v251
    %276 = vmatprep.subr.bf16.mxu0 0
    %277 = vmatpush1.bf16.msra.mxu0 0
    %278 = vmatprep.subr.bf16.mxu0 0
    %279 = vmatpush1.bf16.msra.mxu0 0
    %280 = vmatprep.subr.bf16.mxu0 0
    %281 = vmatpush1.bf16.msra.mxu0 0
    %282 = vmatprep.subr.bf16.mxu0 0
    %283 = vmatpush1.bf16.msra.mxu0 0
    %284 = vmatprep.subr.bf16.mxu0 0
    %285 = vmatpush1.bf16.msra.mxu0 0
    %286 = vmatprep.subr.bf16.mxu0 0
    %287 = vmatpush1.bf16.msra.mxu0 0
    %288 = vmatprep.subr.bf16.mxu0 0
    %289 = vmatpush1.bf16.msra.mxu0 0
    %290 = vmatprep.subr.bf16.mxu0 0
    %291 = vmatpush1.bf16.msra.mxu0 0
    %292 = vmatprep.mubr.bf16.mxu0 0
    %293 = vmatmul.mubr.bf16.gmra.mrb[0].mxu0 %v195
    %v294 = vpop.f32.mrb[0].mxu0
    %v295 = vadd.f32 0.0, %v294
    %v296 = vpop.f32.mrb[0].mxu0
    %v297 = vpop.f32.mrb[0].mxu0
    %v298 = vadd.f32 0.0, %v297
    %v299 = vpop.f32.mrb[0].mxu0
    %300 = vdwg.mxu0
    %v301 = vld [vmem:[#allocation7] sm:$0xf]
    %v302 = vld [vmem:[#allocation7 + $0x4] sm:$0xf]
    %v303 = vld [vmem:[#allocation8] sm:$0xf]
    %v304 = vld [vmem:[#allocation8 + $0x4] sm:$0xf]
    %v305 = vld [vmem:[#allocation8 + $0x8] sm:$0xf]
    %v306 = vld [vmem:[#allocation8 + $0xc] sm:$0xf]
    %v307 = vld [vmem:[#allocation8 + $0x10] sm:$0xf]
    %v308 = vld [vmem:[#allocation8 + $0x14] sm:$0xf]
    %v309 = vld [vmem:[#allocation8 + $0x18] sm:$0xf]
    %v310 = vld [vmem:[#allocation8 + $0x1c] sm:$0xf]
    %v311 = vld [vmem:[#allocation8 + $0x20] sm:$0xf]
    %v312 = vld [vmem:[#allocation8 + $0x24] sm:$0xf]
    %v313 = vld [vmem:[#allocation8 + $0x28] sm:$0xf]
    %v314 = vld [vmem:[#allocation8 + $0x2c] sm:$0xf]
    %v315 = vld [vmem:[#allocation8 + $0x30] sm:$0xf]
    %v316 = vld [vmem:[#allocation8 + $0x34] sm:$0xf]
    %v317 = vld [vmem:[#allocation8 + $0x38] sm:$0xf]
    %v318 = vld [vmem:[#allocation8 + $0x3c] sm:$0xf]
    %v321 = vunpack.c.l.b16 %v301
    %v322 = vunpack.c.l.b16 %v302
    %v323 = vpack.c.b16 %v322, %v321
    %v341 = vunpack.c.l.b16 %v303
    %v342 = vunpack.c.l.b16 %v304
    %v343 = vunpack.c.l.b16 %v305
    %v344 = vunpack.c.l.b16 %v306
    %v345 = vunpack.c.l.b16 %v307
    %v346 = vunpack.c.l.b16 %v308
    %v347 = vunpack.c.l.b16 %v309
    %v348 = vunpack.c.l.b16 %v310
    %v349 = vunpack.c.l.b16 %v311
    %v350 = vunpack.c.l.b16 %v312
    %v351 = vunpack.c.l.b16 %v313
    %v352 = vunpack.c.l.b16 %v314
    %v353 = vunpack.c.l.b16 %v315
    %v354 = vunpack.c.l.b16 %v316
    %v355 = vunpack.c.l.b16 %v317
    %v356 = vunpack.c.l.b16 %v318
    %v357 = vpack.c.b16 %v342, %v341
    %v358 = vpack.c.b16 %v344, %v343
    %v359 = vpack.c.b16 %v346, %v345
    %v360 = vpack.c.b16 %v348, %v347
    %v361 = vpack.c.b16 %v350, %v349
    %v362 = vpack.c.b16 %v352, %v351
    %v363 = vpack.c.b16 %v354, %v353
    %v364 = vpack.c.b16 %v356, %v355
    %373 = vmatprep.subr.bf16.mxu0 0
    %374 = vmatpush1.bf16.msra.mxu0 %v357
    %375 = vmatprep.subr.bf16.mxu0 0
    %376 = vmatpush1.bf16.msra.mxu0 %v358
    %377 = vmatprep.subr.bf16.mxu0 0
    %378 = vmatpush1.bf16.msra.mxu0 %v359
    %379 = vmatprep.subr.bf16.mxu0 0
    %380 = vmatpush1.bf16.msra.mxu0 %v360
    %381 = vmatprep.subr.bf16.mxu0 0
    %382 = vmatpush1.bf16.msra.mxu0 %v361
    %383 = vmatprep.subr.bf16.mxu0 0
    %384 = vmatpush1.bf16.msra.mxu0 %v362
    %385 = vmatprep.subr.bf16.mxu0 0
    %386 = vmatpush1.bf16.msra.mxu0 %v363
    %387 = vmatprep.subr.bf16.mxu0 0
    %388 = vmatpush1.bf16.msra.mxu0 %v364
    %389 = vmatprep.subr.bf16.mxu0 0
    %390 = vmatpush1.bf16.msra.mxu0 0
    %391 = vmatprep.subr.bf16.mxu0 0
    %392 = vmatpush1.bf16.msra.mxu0 0
    %393 = vmatprep.subr.bf16.mxu0 0
    %394 = vmatpush1.bf16.msra.mxu0 0
    %395 = vmatprep.subr.bf16.mxu0 0
    %396 = vmatpush1.bf16.msra.mxu0 0
    %397 = vmatprep.subr.bf16.mxu0 0
    %398 = vmatpush1.bf16.msra.mxu0 0
    %399 = vmatprep.subr.bf16.mxu0 0
    %400 = vmatpush1.bf16.msra.mxu0 0
    %401 = vmatprep.subr.bf16.mxu0 0
    %402 = vmatpush1.bf16.msra.mxu0 0
    %403 = vmatprep.subr.bf16.mxu0 0
    %404 = vmatpush1.bf16.msra.mxu0 0
    %405 = vmatprep.mubr.bf16.mxu0 0
    %406 = vmatmul.mubr.bf16.gmra.mrb[0].mxu0 %v323
    %v407 = vpop.f32.mrb[0].mxu0
    %v408 = vadd.f32 %v295, %v407
    %v409 = vpop.f32.mrb[0].mxu0
    %v410 = vpop.f32.mrb[0].mxu0
    %v411 = vadd.f32 %v298, %v410
    %v412 = vpop.f32.mrb[0].mxu0
    %413 = vdwg.mxu0
    %v414 = vld [vmem:[%s5] sm:$0x1]
    %v416 = vlaneseq
    %v417 = vshrl.u32 %v416, 7
    %v418 = vsub.s32 0, %v417
    %v419 = vrot.slane %v414, %v418
    %v421 = vadd.f32 %v408, %v419
    %v422 = vadd.f32 %v411, %v419
    %v423 = vmax.f32 %v421, 0.0
    %v424 = vmax.f32 %v422, 0.0
    %v425 = vpack.c.bf16 %v424, %v423
    %v426 = vld [vmem:[#allocation13] sm:$0xf]
    %v427 = vld [vmem:[#allocation13 + $0x4] sm:$0xf]
    %v428 = vld [vmem:[#allocation13 + $0x8] sm:$0xf]
    %v429 = vld [vmem:[#allocation13 + $0xc] sm:$0xf]
    %v430 = vld [vmem:[#allocation13 + $0x10] sm:$0xf]
    %v431 = vld [vmem:[#allocation13 + $0x14] sm:$0xf]
    %v432 = vld [vmem:[#allocation13 + $0x18] sm:$0xf]
    %v433 = vld [vmem:[#allocation13 + $0x1c] sm:$0xf]
    %v434 = vld [vmem:[#allocation13 + $0x20] sm:$0xf]
    %v435 = vld [vmem:[#allocation13 + $0x24] sm:$0xf]
    %v436 = vld [vmem:[#allocation13 + $0x28] sm:$0xf]
    %v437 = vld [vmem:[#allocation13 + $0x2c] sm:$0xf]
    %v438 = vld [vmem:[#allocation13 + $0x30] sm:$0xf]
    %v439 = vld [vmem:[#allocation13 + $0x34] sm:$0xf]
    %v440 = vld [vmem:[#allocation13 + $0x38] sm:$0xf]
    %v441 = vld [vmem:[#allocation13 + $0x3c] sm:$0xf]
    %v458 = vunpack.c.l.b16 %v426
    %v459 = vunpack.c.l.b16 %v427
    %v460 = vunpack.c.l.b16 %v428
    %v461 = vunpack.c.l.b16 %v429
    %v462 = vunpack.c.l.b16 %v430
    %v463 = vunpack.c.l.b16 %v431
    %v464 = vunpack.c.l.b16 %v432
    %v465 = vunpack.c.l.b16 %v433
    %v466 = vunpack.c.l.b16 %v434
    %v467 = vunpack.c.l.b16 %v435
    %v468 = vunpack.c.l.b16 %v436
    %v469 = vunpack.c.l.b16 %v437
    %v470 = vunpack.c.l.b16 %v438
    %v471 = vunpack.c.l.b16 %v439
    %v472 = vunpack.c.l.b16 %v440
    %v473 = vunpack.c.l.b16 %v441
    %v474 = vpack.c.b16 %v459, %v458
    %v475 = vpack.c.b16 %v461, %v460
    %v476 = vpack.c.b16 %v463, %v462
    %v477 = vpack.c.b16 %v465, %v464
    %v478 = vpack.c.b16 %v467, %v466
    %v479 = vpack.c.b16 %v469, %v468
    %v480 = vpack.c.b16 %v471, %v470
    %v481 = vpack.c.b16 %v473, %v472
    %490 = vmatprep.subr.bf16.mxu0 0
    %491 = vmatpush1.bf16.msra.mxu0 %v474
    %492 = vmatprep.subr.bf16.mxu0 0
    %493 = vmatpush1.bf16.msra.mxu0 %v475
    %494 = vmatprep.subr.bf16.mxu0 0
    %495 = vmatpush1.bf16.msra.mxu0 %v476
    %496 = vmatprep.subr.bf16.mxu0 0
    %497 = vmatpush1.bf16.msra.mxu0 %v477
    %498 = vmatprep.subr.bf16.mxu0 0
    %499 = vmatpush1.bf16.msra.mxu0 %v478
    %500 = vmatprep.subr.bf16.mxu0 0
    %501 = vmatpush1.bf16.msra.mxu0 %v479
    %502 = vmatprep.subr.bf16.mxu0 0
    %503 = vmatpush1.bf16.msra.mxu0 %v480
    %504 = vmatprep.subr.bf16.mxu0 0
    %505 = vmatpush1.bf16.msra.mxu0 %v481
    %506 = vmatprep.subr.bf16.mxu0 0
    %507 = vmatpush1.bf16.msra.mxu0 0
    %508 = vmatprep.subr.bf16.mxu0 0
    %509 = vmatpush1.bf16.msra.mxu0 0
    %510 = vmatprep.subr.bf16.mxu0 0
    %511 = vmatpush1.bf16.msra.mxu0 0
    %512 = vmatprep.subr.bf16.mxu0 0
    %513 = vmatpush1.bf16.msra.mxu0 0
    %514 = vmatprep.subr.bf16.mxu0 0
    %515 = vmatpush1.bf16.msra.mxu0 0
    %516 = vmatprep.subr.bf16.mxu0 0
    %517 = vmatpush1.bf16.msra.mxu0 0
    %518 = vmatprep.subr.bf16.mxu0 0
    %519 = vmatpush1.bf16.msra.mxu0 0
    %520 = vmatprep.subr.bf16.mxu0 0
    %521 = vmatpush1.bf16.msra.mxu0 0
    %522 = vmatprep.mubr.bf16.mxu0 0
    %523 = vmatmul.mubr.bf16.gmra.mrb[0].mxu0 %v425
    %v524 = vpop.f32.mrb[0].mxu0
    %v525 = vadd.f32 0.0, %v524
    %v526 = vpop.f32.mrb[0].mxu0
    %v527 = vpop.f32.mrb[0].mxu0
    %v528 = vadd.f32 0.0, %v527
    %v529 = vpop.f32.mrb[0].mxu0
    %530 = vdwg.mxu0
    %v531 = vld [vmem:[#allocation5] sm:$0xf]
    %v532 = vpack.c.bf16 %v528, %v525
    %vm533 = vcmask 130048
    %v535 = vsel %vm533, %v531, 0
    %537 = vmatprep.subr.bf16.mxu0 0
    %538 = vmatpush1.bf16.msra.mxu0 %v532
    %539 = vmatprep.subr.bf16.mxu0 0
    %540 = vmatpush1.bf16.msra.mxu0 0
    %541 = vmatprep.subr.bf16.mxu0 0
    %542 = vmatpush1.bf16.msra.mxu0 0
    %543 = vmatprep.subr.bf16.mxu0 0
    %544 = vmatpush1.bf16.msra.mxu0 0
    %545 = vmatprep.subr.bf16.mxu0 0
    %546 = vmatpush1.bf16.msra.mxu0 0
    %547 = vmatprep.subr.bf16.mxu0 0
    %548 = vmatpush1.bf16.msra.mxu0 0
    %549 = vmatprep.subr.bf16.mxu0 0
    %550 = vmatpush1.bf16.msra.mxu0 0
    %551 = vmatprep.subr.bf16.mxu0 0
    %552 = vmatpush1.bf16.msra.mxu0 0
    %553 = vmatprep.subr.bf16.mxu0 0
    %554 = vmatpush1.bf16.msra.mxu0 0
    %555 = vmatprep.subr.bf16.mxu0 0
    %556 = vmatpush1.bf16.msra.mxu0 0
    %557 = vmatprep.subr.bf16.mxu0 0
    %558 = vmatpush1.bf16.msra.mxu0 0
    %559 = vmatprep.subr.bf16.mxu0 0
    %560 = vmatpush1.bf16.msra.mxu0 0
    %561 = vmatprep.subr.bf16.mxu0 0
    %562 = vmatpush1.bf16.msra.mxu0 0
    %563 = vmatprep.subr.bf16.mxu0 0
    %564 = vmatpush1.bf16.msra.mxu0 0
    %565 = vmatprep.subr.bf16.mxu0 0
    %566 = vmatpush1.bf16.msra.mxu0 0
    %567 = vmatprep.subr.bf16.mxu0 0
    %568 = vmatpush1.bf16.msra.mxu0 0
    %569 = vmatprep.mubr.bf16.mxu0 0
    %570 = vmatmul.mubr.bf16.gmra.mrb[0].mxu0 %v535
    %v571 = vpop.f32.mrb[0].mxu0
    %v572 = vadd.f32 0.0, %v571
    %v573 = vpop.f32.mrb[0].mxu0
    %v574 = vpop.f32.mrb[0].mxu0
    %v575 = vpop.f32.mrb[0].mxu0
    %576 = vdwg.mxu0
    %v577 = vld [vmem:[#allocation11] sm:$0xf]
    %v578 = vld [vmem:[#allocation11 + $0x4] sm:$0xf]
    %v579 = vld [vmem:[#allocation11 + $0x8] sm:$0xf]
    %v580 = vld [vmem:[#allocation11 + $0xc] sm:$0xf]
    %v581 = vld [vmem:[#allocation11 + $0x10] sm:$0xf]
    %v582 = vld [vmem:[#allocation11 + $0x14] sm:$0xf]
    %v583 = vld [vmem:[#allocation11 + $0x18] sm:$0xf]
    %v584 = vld [vmem:[#allocation11 + $0x1c] sm:$0xf]
    %v585 = vld [vmem:[#allocation11 + $0x20] sm:$0xf]
    %v586 = vld [vmem:[#allocation11 + $0x24] sm:$0xf]
    %v587 = vld [vmem:[#allocation11 + $0x28] sm:$0xf]
    %v588 = vld [vmem:[#allocation11 + $0x2c] sm:$0xf]
    %v589 = vld [vmem:[#allocation11 + $0x30] sm:$0xf]
    %v590 = vld [vmem:[#allocation11 + $0x34] sm:$0xf]
    %v591 = vld [vmem:[#allocation11 + $0x38] sm:$0xf]
    %v592 = vld [vmem:[#allocation11 + $0x3c] sm:$0xf]
    %v609 = vunpack.c.l.b16 %v577
    %v610 = vunpack.c.l.b16 %v578
    %v611 = vunpack.c.l.b16 %v579
    %v612 = vunpack.c.l.b16 %v580
    %v613 = vunpack.c.l.b16 %v581
    %v614 = vunpack.c.l.b16 %v582
    %v615 = vunpack.c.l.b16 %v583
    %v616 = vunpack.c.l.b16 %v584
    %v617 = vunpack.c.l.b16 %v585
    %v618 = vunpack.c.l.b16 %v586
    %v619 = vunpack.c.l.b16 %v587
    %v620 = vunpack.c.l.b16 %v588
    %v621 = vunpack.c.l.b16 %v589
    %v622 = vunpack.c.l.b16 %v590
    %v623 = vunpack.c.l.b16 %v591
    %v624 = vunpack.c.l.b16 %v592
    %v625 = vpack.c.b16 %v610, %v609
    %v626 = vpack.c.b16 %v612, %v611
    %v627 = vpack.c.b16 %v614, %v613
    %v628 = vpack.c.b16 %v616, %v615
    %v629 = vpack.c.b16 %v618, %v617
    %v630 = vpack.c.b16 %v620, %v619
    %v631 = vpack.c.b16 %v622, %v621
    %v632 = vpack.c.b16 %v624, %v623
    %641 = vmatprep.subr.bf16.mxu0 0
    %642 = vmatpush1.bf16.msra.mxu0 %v625
    %643 = vmatprep.subr.bf16.mxu0 0
    %644 = vmatpush1.bf16.msra.mxu0 %v626
    %645 = vmatprep.subr.bf16.mxu0 0
    %646 = vmatpush1.bf16.msra.mxu0 %v627
    %647 = vmatprep.subr.bf16.mxu0 0
    %648 = vmatpush1.bf16.msra.mxu0 %v628
    %649 = vmatprep.subr.bf16.mxu0 0
    %650 = vmatpush1.bf16.msra.mxu0 %v629
    %651 = vmatprep.subr.bf16.mxu0 0
    %652 = vmatpush1.bf16.msra.mxu0 %v630
    %653 = vmatprep.subr.bf16.mxu0 0
    %654 = vmatpush1.bf16.msra.mxu0 %v631
    %655 = vmatprep.subr.bf16.mxu0 0
    %656 = vmatpush1.bf16.msra.mxu0 %v632
    %657 = vmatprep.subr.bf16.mxu0 0
    %658 = vmatpush1.bf16.msra.mxu0 0
    %659 = vmatprep.subr.bf16.mxu0 0
    %660 = vmatpush1.bf16.msra.mxu0 0
    %661 = vmatprep.subr.bf16.mxu0 0
    %662 = vmatpush1.bf16.msra.mxu0 0
    %663 = vmatprep.subr.bf16.mxu0 0
    %664 = vmatpush1.bf16.msra.mxu0 0
    %665 = vmatprep.subr.bf16.mxu0 0
    %666 = vmatpush1.bf16.msra.mxu0 0
    %667 = vmatprep.subr.bf16.mxu0 0
    %668 = vmatpush1.bf16.msra.mxu0 0
    %669 = vmatprep.subr.bf16.mxu0 0
    %670 = vmatpush1.bf16.msra.mxu0 0
    %671 = vmatprep.subr.bf16.mxu0 0
    %672 = vmatpush1.bf16.msra.mxu0 0
    %673 = vmatprep.mubr.bf16.mxu0 0
    %674 = vmatmul.mubr.bf16.gmra.mrb[0].mxu0 %v425
    %v675 = vpop.f32.mrb[0].mxu0
    %v676 = vadd.f32 %v572, %v675
    %v677 = vpop.f32.mrb[0].mxu0
    %v678 = vpop.f32.mrb[0].mxu0
    %v679 = vpop.f32.mrb[0].mxu0
    %680 = vdwg.mxu0
    %v681 = vld [vmem:[%s8] sm:$0x1]
    %v683 = vlaneseq
    %v684 = vshrl.u32 %v683, 7
    %v685 = vsub.s32 0, %v684
    %v686 = vrot.slane %v681, %v685
    %v688 = vadd.f32 %v676, %v686
    %689 = vst [vmem:[#allocation14] sm:$0xff] %v688
    // Predicated region
    $region66: #{tpu_custom_call.1} parent=1 // pred_check
      _
    $region67: #{tpu_custom_call.1} parent=1 // pred_check_branch
      %691 = sbr.rel (0) target = $region69
    $region68: #{tpu_custom_call.1} parent=1 // pred_region
      %s693 = ssub.s32 128, 128
      %694 = vsyncadd [#allocation4], %s693
      %s696 = sshll.u32 [#allocation14], 4
      %s697 = int_to_ptr.vmem [resolvable:$true] %s696
      %699 = dma.vmem_to_hbm [thread:$0]  %s697, 128, %s9, [#allocation4]
    $region69: #{tpu_custom_call.1} parent=1 // pred_fallthru
      _
    // Predicated region
    $region70: #{tpu_custom_call.1} parent=1 // pred_check
      _
    $region71: #{tpu_custom_call.1} parent=1 // pred_check_branch
      %701 = sbr.rel (0) target = $region73
    $region72: #{tpu_custom_call.1} parent=1 // pred_region
      %702 = dma.done [#allocation4], 128
    $region73: #{tpu_custom_call.1} parent=1 // pred_fallthru
      _
    %703 = vsyncpa [#allocation3], 1
    %704 = vsyncpa [#allocation6], 1
    %705 = vsyncpa [#allocation9], 1
    %706 = vsyncpa [#allocation12], 1
    %707 = vsyncpa [#allocation4], 1

</llo_original>
